<compile_context>
chip_gen: v7x
topology: tpu7x:2x2x1
jax: 0.10.0
libtpu: 0.0.40
codegen_flags: <defaults>
</compile_context>

<pallas_src>
import jax
import jax.numpy as jnp
from jax.experimental import pallas as pl
from jax.experimental.pallas import tpu as pltpu

LANE = 128
SUB = 8


def pand_kernel(x_ref, w_ref, b_ref, o_ref, acc_ref):
    """One (batch tile, contraction tile) step of the fused AND-of-predicates.

    x_ref:   [TM, TD]     batch tile (rows on sublanes, features on lanes)
    w_ref:   [K_pad, TD]  clause-weight slab for this contraction tile
    b_ref:   [K_pad, 1]   clause biases (padded clauses carry +1e30 -> True)
    o_ref:   [1, 1, TM]   lane-dense int32 predicate output for this batch tile
    acc_ref: [K_pad, TM]  f32 running scores, resident across the D axis
    """
    j = pl.program_id(1)

    @pl.when(j == 0)
    def _init():
        acc_ref[...] = jnp.zeros_like(acc_ref)

    # acc[k, m] += sum_d w[k, d] * x[m, d]  (contraction dim on lanes for both
    # operands -> no relayout / transpose; f32 accumulation on the MXU).
    acc_ref[...] += jax.lax.dot_general(
        w_ref[...], x_ref[...],
        dimension_numbers=(((1,), (1,)), ((), ())),
        preferred_element_type=jnp.float32,
        precision=jax.lax.Precision.HIGHEST,
    )

    @pl.when(j == pl.num_programs(1) - 1)
    def _finalize():
        scores_t = acc_ref[...] + b_ref[...]                       # [K_pad, TM]
        # AND over clauses == (min over the clause axis) >= 0.  '>=' keeps
        # exactly-zero scores True, matching each per-clause predicate.
        min_scores = jnp.min(scores_t, axis=0, keepdims=True)      # [1, TM]
        pred = (min_scores >= 0.0).astype(jnp.int32)               # [1, TM]
        o_ref[...] = jnp.reshape(pred, o_ref.shape)


def _round_up(v, m):
    return (v + m - 1) // m * m


def _vmem_budget_bytes():
    """Generation-aware scoped-VMEM target (leaves headroom below physical)."""
    phys = None
    try:
        phys = getattr(pltpu.get_tpu_info(), "vmem_capacity_bytes", None)
    except Exception:
        phys = None
    if phys is None:
        phys = 64 * 1024 * 1024                      # assume worst case (v7x)
    if phys >= 96 * 1024 * 1024:                     # v5e / v6e: 128 MiB phys
        return 64 * 1024 * 1024
    return 48 * 1024 * 1024                          # v7x: 64 MiB phys


def pand_forward(x, w, b, *, tm=2048, compute_dtype=None):
    """x: [B, D], w: [K, D], b: [K]  ->  bool [B].

    Equivalent to: AND_k (x @ w[k] + b[k] >= 0) per batch row.

    compute_dtype: dtype fed to the MXU for x and W.  Defaults to float32 for
    exactness, but an already-bf16 x is NOT widened (halves HBM traffic).
    """
    B, D = x.shape
    K, Dw = w.shape
    assert Dw == D and b.shape == (K,)

    if compute_dtype is None:
        compute_dtype = jnp.bfloat16 if x.dtype == jnp.bfloat16 else jnp.float32
    x_item = jnp.dtype(compute_dtype).itemsize

    # --- clause padding: zero weights + huge positive bias => vacuously True.
    k_pad = max(SUB, _round_up(K, SUB))
    w_p = (jnp.zeros((k_pad, D), compute_dtype)
           .at[:K, :].set(w.astype(compute_dtype)))
    b_p = (jnp.full((k_pad, 1), 1e30, jnp.float32)
           .at[:K, 0].set(b.astype(jnp.float32)))
    # TODO(synk): for K >> 128 clauses, add a K grid axis with a running-min
    # accumulator instead of keeping all K_pad rows in one block.

    vmem_limit = _vmem_budget_bytes()
    budget = vmem_limit - (8 << 20)          # headroom for scratch/out/internal

    # --- contraction tile TD: full D unless even the 128-row tile would blow
    # the budget; then pick a multiple-of-128 divisor of D (keeps the last
    # d-block full so no garbage enters the sum).
    per_d_bytes = 2 * (LANE * x_item + k_pad * x_item)    # x + W, double-buffered
    max_td = max(LANE, budget // per_d_bytes)
    if D <= max_td or D % LANE != 0:
        td = D   # TODO(synk): pad/mask the contraction tail for huge non-128-multiple D
    else:
        td = max(LANE, min(D, (max_td // LANE) * LANE))
        while D % td != 0:
            td -= LANE
    nd = D // td if D % td == 0 else 1
    if nd * td != D:
        td, nd = D, 1

    # --- batch tile TM: as large as the remaining budget allows (x block is
    # double-buffered; W/b blocks are also counted since the pipeline buffers
    # them even with a constant index_map).
    resident_bytes = 2 * (k_pad * td * x_item + k_pad * 4)
    x_budget = max(2 * LANE * td * x_item, budget - resident_bytes)
    max_tm = max(LANE, (x_budget // (2 * td * x_item)) // LANE * LANE)

    tm_eff = max(LANE, min(_round_up(tm, LANE), _round_up(B, LANE), max_tm))
    # Keep >= 2 batch tiles when possible so the "parallel" axis can use both
    # TensorCores on v7x (harmless elsewhere).
    if B > LANE and pl.cdiv(B, tm_eff) < 2:
        tm_eff = max(LANE, _round_up(pl.cdiv(B, 2), LANE))

    num_m = pl.cdiv(B, tm_eff)               # trailing block may be partial; the
    grid = (num_m, nd)                       # garbage rows it reads are sliced off.

    x_p = x.astype(compute_dtype)            # no-op when dtype already matches

    cost = pl.CostEstimate(
        flops=2 * B * D * k_pad,
        transcendentals=0,
        bytes_accessed=B * D * x_item + k_pad * D * x_item + num_m * tm_eff * 4,
    )

    out = pl.pallas_call(
        pand_kernel,
        out_shape=jax.ShapeDtypeStruct((num_m, 1, tm_eff), jnp.int32),
        grid=grid,
        in_specs=[
            # x: one [TM, TD] block per grid step (software pipelined).
            pl.BlockSpec((tm_eff, td), lambda i, j: (i, j)),
            # W: [K_pad, TD] slab per contraction step (resident when nd == 1).
            pl.BlockSpec((k_pad, td), lambda i, j: (0, j)),
            # b: constant block -> resident.
            pl.BlockSpec((k_pad, 1), lambda i, j: (0, 0)),
        ],
        # Lane-dense output slab: last block dim = TM (a multiple of 128),
        # written only on the last contraction step.
        out_specs=pl.BlockSpec((1, 1, tm_eff), lambda i, j: (i, 0, 0)),
        scratch_shapes=[pltpu.VMEM((k_pad, tm_eff), jnp.float32)],
        compiler_params=pltpu.CompilerParams(
            dimension_semantics=("parallel", "arbitrary"),
            vmem_limit_bytes=vmem_limit,
        ),
        cost_estimate=cost,
    )(x_p, w_p, b_p)

    return out.reshape(-1)[:B] != 0


def pand_reference(x, w, b):
    # Pure-JAX reference mirroring the PyTorch forward.
    scores = x.astype(jnp.float32) @ w.astype(jnp.float32).T + b[None, :]  # [B, K]
    results = jnp.transpose(scores >= 0.0)       # stack(dim=0) -> [K, B]
    return jnp.all(results, axis=0)              # [B] bool


if __name__ == "__main__":
    key = jax.random.PRNGKey(0)
    # Deliberately non-aligned sizes: B is not a multiple of the tile and K is
    # not a multiple of 8, exercising the partial trailing block and clause
    # padding paths.
    B, D, K = 500, 128, 3

    kx, kw, kb = jax.random.split(key, 3)
    # Integer-valued inputs with half-integer biases: every clause score is a
    # half-integer, so kernel and reference booleans match exactly.
    x = jax.random.randint(kx, (B, D), -3, 4).astype(jnp.float32)
    w = jax.random.randint(kw, (K, D), -2, 3).astype(jnp.float32)
    b = jax.random.randint(kb, (K,), -10, 11).astype(jnp.float32) + 0.5

    out = pand_forward(x, w, b)                  # default tm (large tiles)
    out = jax.block_until_ready(out)

    ref = pand_reference(x, w, b)
    assert out.shape == (B,) and out.dtype == jnp.bool_
    assert bool(jnp.all(out == ref)), "Pallas PAnd mismatch vs reference"

    print("KERNEL_OK")
</pallas_src>

<mosaic_0001>
module attributes {stable_mosaic.version = 11 : i64} {
  func.func @pand_kernel(%arg0: i32, %arg1: i32, %arg2: memref<256x128xf32, #tpu.memory_space<vmem>>, %arg3: memref<8x128xf32, #tpu.memory_space<vmem>>, %arg4: memref<8x1xf32, #tpu.memory_space<vmem>>, %arg5: memref<1x1x256xi32, #tpu.memory_space<vmem>>, %arg6: memref<8x256xf32, #tpu.memory_space<vmem>>) attributes {dimension_semantics = [#tpu.dimension_semantics<parallel>, #tpu.dimension_semantics<arbitrary>], iteration_bounds = array<i64: 2, 1>, scalar_prefetch = 0 : i64, scratch_operands = 1 : i64, tpu.core_type = #tpu.core_type<tc>, window_params = [{transform_indices = @transform_0, window_bounds = array<i64: 256, 128>}, {transform_indices = @transform_1, window_bounds = array<i64: 8, 128>}, {pipeline_mode = #tpu.pipeline_mode<synchronous>, transform_indices = @transform_2, window_bounds = array<i64: 8, 1>}, {transform_indices = @transform_3, window_bounds = array<i64: 1, 1, 256>}]} {
    %c0_i32 = arith.constant 0 : i32
    %0 = arith.cmpi eq, %arg1, %c0_i32 : i32
    %1 = arith.extui %0 : i1 to i32
    %c0_i32_0 = arith.constant 0 : i32
    %2 = arith.cmpi ne, %1, %c0_i32_0 : i32
    scf.if %2 {
      %cst_10 = arith.constant 0.000000e+00 : f32
      %12 = vector.broadcast %cst_10 : f32 to vector<8x256xf32>
      %c0_11 = arith.constant 0 : index
      %c0_12 = arith.constant 0 : index
      %13 = vector.load %arg6[%c0_11, %c0_12] : memref<8x256xf32, #tpu.memory_space<vmem>>, vector<8x256xf32>
      tpu.vector_store %arg6[%c0_11, %c0_12], %12 {strides = array<i32>} : memref<8x256xf32, #tpu.memory_space<vmem>>, vector<8x256xf32>,
    } else {
    }
    %c0 = arith.constant 0 : index
    %c0_1 = arith.constant 0 : index
    %3 = vector.load %arg6[%c0, %c0_1] : memref<8x256xf32, #tpu.memory_space<vmem>>, vector<8x256xf32>
    %c0_2 = arith.constant 0 : index
    %c0_3 = arith.constant 0 : index
    %4 = vector.load %arg3[%c0_2, %c0_3] : memref<8x128xf32, #tpu.memory_space<vmem>>, vector<8x128xf32>
    %c0_4 = arith.constant 0 : index
    %c0_5 = arith.constant 0 : index
    %5 = vector.load %arg2[%c0_4, %c0_5] : memref<256x128xf32, #tpu.memory_space<vmem>>, vector<256x128xf32>
    %cst = arith.constant dense<0.000000e+00> : vector<8x256xf32>
    %6 = tpu.matmul %4, %5, %cst {dimension_numbers = #tpu.dot_dimension_numbers<[1], [1], [0], [0], [0, 0, 1, 0], [], []>, precision = #tpu.contract_precision<fp32>} : vector<8x128xf32>, vector<256x128xf32>, vector<8x256xf32> -> vector<8x256xf32>
    %7 = arith.addf %3, %6 : vector<8x256xf32>
    %c0_6 = arith.constant 0 : index
    %c0_7 = arith.constant 0 : index
    %8 = vector.load %arg6[%c0_6, %c0_7] : memref<8x256xf32, #tpu.memory_space<vmem>>, vector<8x256xf32>
    tpu.vector_store %arg6[%c0_6, %c0_7], %7 {strides = array<i32>} : memref<8x256xf32, #tpu.memory_space<vmem>>, vector<8x256xf32>,
    %c0_i32_8 = arith.constant 0 : i32
    %9 = arith.cmpi eq, %arg1, %c0_i32_8 : i32
    %10 = arith.extui %9 : i1 to i32
    %c0_i32_9 = arith.constant 0 : i32
    %11 = arith.cmpi ne, %10, %c0_i32_9 : i32
    scf.if %11 {
      %c0_10 = arith.constant 0 : index
      %c0_11 = arith.constant 0 : index
      %12 = vector.load %arg6[%c0_10, %c0_11] : memref<8x256xf32, #tpu.memory_space<vmem>>, vector<8x256xf32>
      %c0_12 = arith.constant 0 : index
      %c0_13 = arith.constant 0 : index
      %13 = vector.load %arg4[%c0_12, %c0_13] : memref<8x1xf32, #tpu.memory_space<vmem>>, vector<8x1xf32>
      %14 = vector.broadcast %13 : vector<8x1xf32> to vector<8x256xf32>
      %15 = arith.addf %12, %14 : vector<8x256xf32>
      %cst_14 = arith.constant dense<0x7F800000> : vector<256xf32>
      %16 = vector.multi_reduction <minimumf>, %15, %cst_14 [0] : vector<8x256xf32> to vector<256xf32>
      %17 = vector.shape_cast %16 : vector<256xf32> to vector<1x256xf32>
      %cst_15 = arith.constant 0.000000e+00 : f32
      %18 = vector.broadcast %cst_15 : f32 to vector<1x256xf32>
      %19 = arith.cmpf oge, %17, %18 : vector<1x256xf32>
      %20 = arith.extui %19 : vector<1x256xi1> to vector<1x256xi32>
      %21 = vector.shape_cast %20 : vector<1x256xi32> to vector<1x1x256xi32>
      %c0_16 = arith.constant 0 : index
      %c0_17 = arith.constant 0 : index
      %c0_18 = arith.constant 0 : index
      %22 = vector.load %arg5[%c0_16, %c0_17, %c0_18] : memref<1x1x256xi32, #tpu.memory_space<vmem>>, vector<1x1x256xi32>
      tpu.vector_store %arg5[%c0_16, %c0_17, %c0_18], %21 {strides = array<i32>} : memref<1x1x256xi32, #tpu.memory_space<vmem>>, vector<1x1x256xi32>,
    } else {
    }
    return
  }
  func.func @transform_0(%arg0: i32, %arg1: i32) -> (i32, i32) {
    %c0_i32 = arith.constant 0 : i32
    return %arg0, %arg1 : i32, i32
  }
  func.func @transform_1(%arg0: i32, %arg1: i32) -> (i32, i32) {
    %c0_i32 = arith.constant 0 : i32
    %c0_i32_0 = arith.constant 0 : i32
    return %c0_i32, %arg1 : i32, i32
  }
  func.func @transform_2(%arg0: i32, %arg1: i32) -> (i32, i32) {
    %c0_i32 = arith.constant 0 : i32
    %c0_i32_0 = arith.constant 0 : i32
    %c0_i32_1 = arith.constant 0 : i32
    return %c0_i32, %c0_i32_0 : i32, i32
  }
  func.func @transform_3(%arg0: i32, %arg1: i32) -> (i32, i32, i32) {
    %c0_i32 = arith.constant 0 : i32
    %c0_i32_0 = arith.constant 0 : i32
    %c0_i32_1 = arith.constant 0 : i32
    return %arg0, %c0_i32, %c0_i32_0 : i32, i32, i32
  }
}

</mosaic_0001>

<llo_original>
// kernel: tpu_custom_call.1
$region0: #{tpu_custom_call.1}
  #allocation0 [shape = 'u32[]', space=smem, size = 0x4, offset = 0x4, fixed_abs, tag = 'smem constant byte address 0x4 - core index']
  #allocation1 [shape = 'u32[144,128]{1,0:T(1,128)}', space=vmem, size = 0x12000, scoped, tag = 'internal scratch']
  #allocation2 [shape = 'f32[8,256]{1,0:T(8,128)}', space=vmem, size = 0x2000, scoped, tag = 'scratch operand']
  %s0 = inlined_call_operand.hbm [shape: f32[500,128], index: 0, kind: input, shape index: {}]
  %s1 = inlined_call_operand.vmem [shape: f32[8,128], index: 1, kind: input, shape index: {}]
  %s2 = inlined_call_operand.vmem [shape: f32[8,1], index: 2, kind: input, shape index: {}]
  %s3 = inlined_call_operand.hbm [shape: s32[2,1,256], index: 3, kind: output, shape index: {}]
  %s4 = sld [smem:[#allocation0]]
  $region57: #{tpu_custom_call.1} parent=0
    _
  %s6 = ssub.s32 1, %s4
  %s7 = scalar_select 0, %s6, %s4
  $region1: #{tpu_custom_call.1} parent=0
    #allocation3 [shape = 'u8[262144]{0}', space=vmem, size = 0x40000, scoped, tag = 'input window, operand 0']
    #allocation4 [shape = 's32[2]{0}', space=sflag, size = 0x8, scoped, tag = 'scoped memory for tpu_custom_call.1']
    #allocation5 [shape = 's32[2]{0}', space=sflag, size = 0x8, scoped, tag = 'scoped memory for tpu_custom_call.1']
    #allocation6 [shape = 'u8[2048]{0}', space=vmem, size = 0x800, scoped, tag = 'output window, operand 0']
    %8 = vsyncpa [#allocation4], 0
    %s9 = scalar_lea.sflag [#allocation4], 1
    %10 = vsyncpa %s9, 0
    %11 = vsyncpa [#allocation5], 0
    %s12 = scalar_lea.sflag [#allocation5], 1
    %13 = vsyncpa %s12, 0
    loop: start=0, step=1, limit=4
    $region2: #{tpu_custom_call.1} parent=1 // loop_pre_header
      _
    $region3: #{tpu_custom_call.1} parent=1 // loop_header
      %s15 = sphi 0, %s19
      %p16 = scmp.ge.s32.totalorder %s15, 4
      %s22 = sphi 0, %s34
      %s23 = sphi 0, %s30
      %s24 = sphi 0, %s22
      %s25 = sphi 0, %s23
      %s26 = sphi 0, %s24
      %s27 = sphi 0, %s25
      %s39 = sphi 0, %s41
      %s42 = sphi 0, %s39
      %s43 = sphi 0, %s42
      %s59 = sphi 0, %s43
      %s65 = sphi 0, %s67
      %s68 = sphi 0, %s65
      %s69 = sphi 0, %s68
      %s85 = sphi 0, %s69
      %s89 = sphi 0, %s89
      %s91 = sphi 0, %s89
      %s92 = sphi 0, %s91
      %s106 = sphi 0, %s92
      %s112 = sphi 0, %s114
      %s115 = sphi 0, %s112
      %s116 = sphi 0, %s115
      %s132 = sphi 0, %s116
    $region4: #{tpu_custom_call.1} parent=1 // loop_header_branch
      %18 = sbr.rel (%p16) target = $region8
    $region5: #{tpu_custom_call.1} parent=1 // loop_body
      %s20 = ssub.s32 %s15, 1
      %s21 = ssub.s32 %s15, 2
      %s28 = sadd.s32 1, %s23
      %p29 = scmp.ge.s32.totalorder %s28, 1
      %s30 = scalar_select %p29, 0, %s28
      %s31 = sadd.s32 1, %s22
      %s32 = scalar_select %p29, %s31, %s22
      %p33 = scmp.ge.s32.totalorder %s32, 2
      %s34 = scalar_select %p33, 0, %s32
      %s35 = ssub.s32 %s22, %s34
      %s36 = ssub.s32 %s23, %s30
      %s37 = sor.u32 %s35, %s36
      %p38 = scmp.eq.s32.totalorder %s37, 0
      %s40 = sadd.s32 %s39, 1
      %s41 = scalar_select %p38, %s39, %s40
      %p44 = pneg %p38
      %p45 = scmp.eq.s32.totalorder %s15, 1
      %p46 = por %p44, %p45
      %p47 = scmp.ne.s32.totalorder %s39, %s42
      %p48 = scmp.eq.s32.totalorder %s15, 0
      %p49 = por %p47, %p48
      %p50 = scmp.ne.s32.totalorder %s39, %s42
      %p51 = scmp.eq.s32.totalorder %s20, 1
      %p52 = por %p50, %p51
      %p53 = scmp.ne.s32.totalorder %s42, %s43
      %p54 = scmp.eq.s32.totalorder %s20, 0
      %p55 = por %p53, %p54
      %p56 = scmp.ne.s32.totalorder %s42, %s43
      %p57 = scmp.eq.s32.totalorder %s21, 1
      %p58 = por %p56, %p57
      %p60 = scmp.ne.s32.totalorder %s43, %s59
      %p61 = scmp.eq.s32.totalorder %s21, 0
      %p62 = por %p60, %p61
      %s63 = ssub.s32 %s23, %s30
      %p64 = scmp.eq.s32.totalorder %s63, 0
      %s66 = sadd.s32 %s65, 1
      %s67 = scalar_select %p64, %s65, %s66
      %p70 = pneg %p64
      %p71 = scmp.eq.s32.totalorder %s15, 1
      %p72 = por %p70, %p71
      %p73 = scmp.ne.s32.totalorder %s65, %s68
      %p74 = scmp.eq.s32.totalorder %s15, 0
      %p75 = por %p73, %p74
      %p76 = scmp.ne.s32.totalorder %s65, %s68
      %p77 = scmp.eq.s32.totalorder %s20, 1
      %p78 = por %p76, %p77
      %p79 = scmp.ne.s32.totalorder %s68, %s69
      %p80 = scmp.eq.s32.totalorder %s20, 0
      %p81 = por %p79, %p80
      %p82 = scmp.ne.s32.totalorder %s68, %s69
      %p83 = scmp.eq.s32.totalorder %s21, 1
      %p84 = por %p82, %p83
      %p86 = scmp.ne.s32.totalorder %s69, %s85
      %p87 = scmp.eq.s32.totalorder %s21, 0
      %p88 = por %p86, %p87
      %s90 = sadd.s32 %s89, 1
      %p93 = scmp.eq.s32.totalorder %s15, 1
      %p94 = scmp.ne.s32.totalorder %s89, %s91
      %p95 = scmp.eq.s32.totalorder %s15, 0
      %p96 = por %p94, %p95
      %p97 = scmp.ne.s32.totalorder %s89, %s91
      %p98 = scmp.eq.s32.totalorder %s20, 1
      %p99 = por %p97, %p98
      %p100 = scmp.ne.s32.totalorder %s91, %s92
      %p101 = scmp.eq.s32.totalorder %s20, 0
      %p102 = por %p100, %p101
      %p103 = scmp.ne.s32.totalorder %s91, %s92
      %p104 = scmp.eq.s32.totalorder %s21, 1
      %p105 = por %p103, %p104
      %p107 = scmp.ne.s32.totalorder %s92, %s106
      %p108 = scmp.eq.s32.totalorder %s21, 0
      %p109 = por %p107, %p108
      %s110 = ssub.s32 %s22, %s34
      %p111 = scmp.eq.s32.totalorder %s110, 0
      %s113 = sadd.s32 %s112, 1
      %s114 = scalar_select %p111, %s112, %s113
      %p117 = pneg %p111
      %p118 = scmp.eq.s32.totalorder %s15, 1
      %p119 = por %p117, %p118
      %p120 = scmp.ne.s32.totalorder %s112, %s115
      %p121 = scmp.eq.s32.totalorder %s15, 0
      %p122 = por %p120, %p121
      %p123 = scmp.ne.s32.totalorder %s112, %s115
      %p124 = scmp.eq.s32.totalorder %s20, 1
      %p125 = por %p123, %p124
      %p126 = scmp.ne.s32.totalorder %s115, %s116
      %p127 = scmp.eq.s32.totalorder %s20, 0
      %p128 = por %p126, %p127
      %p129 = scmp.ne.s32.totalorder %s115, %s116
      %p130 = scmp.eq.s32.totalorder %s21, 1
      %p131 = por %p129, %p130
      %p133 = scmp.ne.s32.totalorder %s116, %s132
      %p134 = scmp.eq.s32.totalorder %s21, 0
      %p135 = por %p133, %p134
      %p136 = scmp.le.s32.totalorder 1, %s15
      %p137 = scmp.lt.s32.totalorder %s15, 3
      %p138 = pnand %p136, %p137
      %p139 = pneg %p138
      // Predicated region
      $region9: #{tpu_custom_call.1} parent=5 // pred_check
        _
      $region10: #{tpu_custom_call.1} parent=5 // pred_check_branch
        %141 = sbr.rel (%p138) target = $region12
      $region11: #{tpu_custom_call.1} parent=5 // pred_region
        %s142 = ssub.s32 %s15, 1
        // Predicated region
        $region13: #{tpu_custom_call.1} parent=11 // pred_check
          %p143 = pneg %p81
        $region14: #{tpu_custom_call.1} parent=11 // pred_check_branch
          %145 = sbr.rel (%p143) target = $region16
        $region15: #{tpu_custom_call.1} parent=11 // pred_region
          %p146 = scmp.lt.s32.totalorder %s25, 0
          %s147 = scalar_select %p146, %s25, 0
          %s148 = smul.addr %s147, 8
          %s149 = scalar_lea.vmem %s1, %s148
        $region16: #{tpu_custom_call.1} parent=11 // pred_fallthru
          _
        // Predicated region
        $region17: #{tpu_custom_call.1} parent=11 // pred_check
          %p150 = pneg %p102
        $region18: #{tpu_custom_call.1} parent=11 // pred_check_branch
          %152 = sbr.rel (%p150) target = $region20
        $region19: #{tpu_custom_call.1} parent=11 // pred_region
          _
        $region20: #{tpu_custom_call.1} parent=11 // pred_fallthru
          _
      $region12: #{tpu_custom_call.1} parent=5 // pred_fallthru
        _
      %p153 = scmp.lt.s32.totalorder %s15, 2
      // Predicated region
      $region21: #{tpu_custom_call.1} parent=5 // pred_check
        %p154 = pneg %p153
      $region22: #{tpu_custom_call.1} parent=5 // pred_check_branch
        %156 = sbr.rel (%p154) target = $region24
      $region23: #{tpu_custom_call.1} parent=5 // pred_region
        // Predicated region
        $region25: #{tpu_custom_call.1} parent=23 // pred_check
          %p157 = pneg %p49
        $region26: #{tpu_custom_call.1} parent=23 // pred_check_branch
          %159 = sbr.rel (%p157) target = $region28
        $region27: #{tpu_custom_call.1} parent=23 // pred_region
          %s160 = sand.u32 %s39, 1
          %s161 = scalar_lea.sflag [#allocation4], %s160
          %s162 = sand.u32 %s39, 1
          %s163 = smul.addr %s162, 256
          %s164 = scalar_lea.vmem [#allocation3], %s163
          %s165 = smul.u32 32, %s22
          %s166 = ssub.s32 63, %s165
          %p167 = scmp.lt.s32.totalorder %s166, 32
          %s168 = scalar_select %p167, %s166, 32
          %s169 = smul.u32 128, %s168
          %s171 = ssub.s32 4096, %s169
          %172 = vsyncadd %s161, %s171
          %p173 = scmp.ne.s32.totalorder 0, %s169
          %s174 = sadd.s32 %s23, %s165
          %s175 = smul.addr %s174, 128
          %s176 = scalar_lea.hbm %s0, %s175
          %s177 = smul.u32 8, %s168
          %s178 = sshll.u32 %s164, 4
          %s179 = int_to_ptr.vmem [resolvable:$true] %s178
          %s180 = sshll.u32 %s177, 4
          %184 = dma.hbm_to_vmem [thread:$0]  (%p173), %s176, %s180, %s179, %s161, 128, 128, 8
        $region28: #{tpu_custom_call.1} parent=23 // pred_fallthru
          _
      $region24: #{tpu_custom_call.1} parent=5 // pred_fallthru
        _
      %p185 = scmp.le.s32.totalorder 1, %s15
      %p186 = scmp.lt.s32.totalorder %s15, 3
      %p187 = pnand %p185, %p186
      %p188 = pneg %p187
      // Predicated region
      $region29: #{tpu_custom_call.1} parent=5 // pred_check
        _
      $region30: #{tpu_custom_call.1} parent=5 // pred_check_branch
        %190 = sbr.rel (%p187) target = $region32
      $region31: #{tpu_custom_call.1} parent=5 // pred_region
        %s191 = ssub.s32 %s15, 1
        %s192 = sand.u32 %s42, 1
        %s193 = scalar_lea.sflag [#allocation4], %s192
        %s194 = sand.u32 %s42, 1
        %s195 = smul.addr %s194, 256
        %s196 = scalar_lea.vmem [#allocation3], %s195
        // Predicated region
        $region33: #{tpu_custom_call.1} parent=31 // pred_check
          %p197 = pneg %p55
        $region34: #{tpu_custom_call.1} parent=31 // pred_check_branch
          %199 = sbr.rel (%p197) target = $region36
        $region35: #{tpu_custom_call.1} parent=31 // pred_region
          %200 = dma.done %s193, 4096
        $region36: #{tpu_custom_call.1} parent=31 // pred_fallthru
          _
        %s201 = sand.u32 %s42, 1
        %s202 = scalar_lea.sflag [#allocation4], %s201
        %s203 = sand.u32 %s42, 1
        %s204 = smul.addr %s203, 256
        %s205 = scalar_lea.vmem [#allocation3], %s204
        %p206 = pneg %p55
        %p207 = pneg %p52
        %p208 = scmp.lt.s32.totalorder %s25, 0
        %s209 = scalar_select %p208, %s25, 0
        %s210 = smul.addr %s209, 8
        %s211 = scalar_lea.vmem %s1, %s210
        %p212 = pneg %p81
        %p213 = pneg %p78
        %p214 = pneg %p102
        %p215 = pneg %p99
        %p216 = pneg %p128
        %p217 = pneg %p125
        %s218 = sand.u32 %s115, 1
        %s219 = scalar_lea.sflag [#allocation5], %s218
        %s220 = sand.u32 %s115, 1
        %s221 = smul.addr %s220, 2
        %s222 = scalar_lea.vmem [#allocation6], %s221
        %s223 = smul.u32 32, %s24
        %s224 = ssub.s32 63, %s223
        %p225 = scmp.lt.s32.totalorder %s224, 32
        %s226 = scalar_select %p225, %s224, 32
        %s227 = smul.u32 128, %s226
        %p228 = scmp.lt.s32.totalorder %s25, 0
        %s229 = scalar_select %p228, %s25, 0
        %s230 = smul.addr %s229, 8
        %s231 = scalar_lea.vmem %s1, %s230
        %p232 = scmp.eq.s32.totalorder %s25, 0
        // Predicated region
        $region37: #{tpu_custom_call.1} parent=31 // pred_check
          %p233 = pneg %p232
        $region38: #{tpu_custom_call.1} parent=31 // pred_check_branch
          %235 = sbr.rel (%p233) target = $region40
        $region39: #{tpu_custom_call.1} parent=31 // pred_region
          %236 = vst [vmem:[#allocation2] sm:$0xff] 0.0
          %237 = vst [vmem:[#allocation2 + $0x8] sm:$0xff] 0.0
        $region40: #{tpu_custom_call.1} parent=31 // pred_fallthru
          _
        %v238 = vld [vmem:[#allocation2] sm:$0xff]
        %v239 = vld [vmem:[#allocation2 + $0x8] sm:$0xff]
        %v240 = vld [vmem:[%s231] sm:$0xff]
        %v241 = vld [vmem:[%s196] sm:$0xff]
        %v242 = vld [vmem:[%s196 + $0x8] sm:$0xff]
        %v243 = vld [vmem:[%s196 + $0x10] sm:$0xff]
        %v244 = vld [vmem:[%s196 + $0x18] sm:$0xff]
        %v245 = vld [vmem:[%s196 + $0x20] sm:$0xff]
        %v246 = vld [vmem:[%s196 + $0x28] sm:$0xff]
        %v247 = vld [vmem:[%s196 + $0x30] sm:$0xff]
        %v248 = vld [vmem:[%s196 + $0x38] sm:$0xff]
        %v249 = vld [vmem:[%s196 + $0x40] sm:$0xff]
        %v250 = vld [vmem:[%s196 + $0x48] sm:$0xff]
        %v251 = vld [vmem:[%s196 + $0x50] sm:$0xff]
        %v252 = vld [vmem:[%s196 + $0x58] sm:$0xff]
        %v253 = vld [vmem:[%s196 + $0x60] sm:$0xff]
        %v254 = vld [vmem:[%s196 + $0x68] sm:$0xff]
        %v255 = vld [vmem:[%s196 + $0x70] sm:$0xff]
        %v256 = vld [vmem:[%s196 + $0x78] sm:$0xff]
        %v257 = vld [vmem:[%s196 + $0x80] sm:$0xff]
        %v258 = vld [vmem:[%s196 + $0x88] sm:$0xff]
        %v259 = vld [vmem:[%s196 + $0x90] sm:$0xff]
        %v260 = vld [vmem:[%s196 + $0x98] sm:$0xff]
        %v261 = vld [vmem:[%s196 + $0xa0] sm:$0xff]
        %v262 = vld [vmem:[%s196 + $0xa8] sm:$0xff]
        %v263 = vld [vmem:[%s196 + $0xb0] sm:$0xff]
        %v264 = vld [vmem:[%s196 + $0xb8] sm:$0xff]
        %v265 = vld [vmem:[%s196 + $0xc0] sm:$0xff]
        %v266 = vld [vmem:[%s196 + $0xc8] sm:$0xff]
        %v267 = vld [vmem:[%s196 + $0xd0] sm:$0xff]
        %v268 = vld [vmem:[%s196 + $0xd8] sm:$0xff]
        %v269 = vld [vmem:[%s196 + $0xe0] sm:$0xff]
        %v270 = vld [vmem:[%s196 + $0xe8] sm:$0xff]
        %v271 = vld [vmem:[%s196 + $0xf0] sm:$0xff]
        %v272 = vld [vmem:[%s196 + $0xf8] sm:$0xff]
        %273 = vmatprep.subr.mxu0 0.0
        %v274 = vand.u32 %v241, 4294901760
        %275 = vmatpush1.xpose.msra.mxu0 %v274
        %276 = vmatprep.subr.mxu0 0.0
        %v277 = vand.u32 %v242, 4294901760
        %278 = vmatpush1.xpose.msra.mxu0 %v277
        %279 = vmatprep.subr.mxu0 0.0
        %v280 = vand.u32 %v243, 4294901760
        %281 = vmatpush1.xpose.msra.mxu0 %v280
        %282 = vmatprep.subr.mxu0 0.0
        %v283 = vand.u32 %v244, 4294901760
        %284 = vmatpush1.xpose.msra.mxu0 %v283
        %285 = vmatprep.subr.mxu0 0.0
        %v286 = vand.u32 %v245, 4294901760
        %287 = vmatpush1.xpose.msra.mxu0 %v286
        %288 = vmatprep.subr.mxu0 0.0
        %v289 = vand.u32 %v246, 4294901760
        %290 = vmatpush1.xpose.msra.mxu0 %v289
        %291 = vmatprep.subr.mxu0 0.0
        %v292 = vand.u32 %v247, 4294901760
        %293 = vmatpush1.xpose.msra.mxu0 %v292
        %294 = vmatprep.subr.mxu0 0.0
        %v295 = vand.u32 %v248, 4294901760
        %296 = vmatpush1.xpose.msra.mxu0 %v295
        %297 = vmatprep.subr.mxu0 0.0
        %v298 = vand.u32 %v249, 4294901760
        %299 = vmatpush1.xpose.msra.mxu0 %v298
        %300 = vmatprep.subr.mxu0 0.0
        %v301 = vand.u32 %v250, 4294901760
        %302 = vmatpush1.xpose.msra.mxu0 %v301
        %303 = vmatprep.subr.mxu0 0.0
        %v304 = vand.u32 %v251, 4294901760
        %305 = vmatpush1.xpose.msra.mxu0 %v304
        %306 = vmatprep.subr.mxu0 0.0
        %v307 = vand.u32 %v252, 4294901760
        %308 = vmatpush1.xpose.msra.mxu0 %v307
        %309 = vmatprep.subr.mxu0 0.0
        %v310 = vand.u32 %v253, 4294901760
        %311 = vmatpush1.xpose.msra.mxu0 %v310
        %312 = vmatprep.subr.mxu0 0.0
        %v313 = vand.u32 %v254, 4294901760
        %314 = vmatpush1.xpose.msra.mxu0 %v313
        %315 = vmatprep.subr.mxu0 0.0
        %v316 = vand.u32 %v255, 4294901760
        %317 = vmatpush1.xpose.msra.mxu0 %v316
        %318 = vmatprep.subr.mxu0 0.0
        %v319 = vand.u32 %v256, 4294901760
        %320 = vmatpush1.xpose.msra.mxu0 %v319
        %321 = vmatprep.subr.mxu0 0.0
        %v322 = vand.u32 %v257, 4294901760
        %323 = vmatpush1.xpose.msra.mxu0 %v322
        %324 = vmatprep.subr.mxu0 0.0
        %v325 = vand.u32 %v258, 4294901760
        %326 = vmatpush1.xpose.msra.mxu0 %v325
        %327 = vmatprep.subr.mxu0 0.0
        %v328 = vand.u32 %v259, 4294901760
        %329 = vmatpush1.xpose.msra.mxu0 %v328
        %330 = vmatprep.subr.mxu0 0.0
        %v331 = vand.u32 %v260, 4294901760
        %332 = vmatpush1.xpose.msra.mxu0 %v331
        %333 = vmatprep.subr.mxu0 0.0
        %v334 = vand.u32 %v261, 4294901760
        %335 = vmatpush1.xpose.msra.mxu0 %v334
        %336 = vmatprep.subr.mxu0 0.0
        %v337 = vand.u32 %v262, 4294901760
        %338 = vmatpush1.xpose.msra.mxu0 %v337
        %339 = vmatprep.subr.mxu0 0.0
        %v340 = vand.u32 %v263, 4294901760
        %341 = vmatpush1.xpose.msra.mxu0 %v340
        %342 = vmatprep.subr.mxu0 0.0
        %v343 = vand.u32 %v264, 4294901760
        %344 = vmatpush1.xpose.msra.mxu0 %v343
        %345 = vmatprep.subr.mxu0 0.0
        %v346 = vand.u32 %v265, 4294901760
        %347 = vmatpush1.xpose.msra.mxu0 %v346
        %348 = vmatprep.subr.mxu0 0.0
        %v349 = vand.u32 %v266, 4294901760
        %350 = vmatpush1.xpose.msra.mxu0 %v349
        %351 = vmatprep.subr.mxu0 0.0
        %v352 = vand.u32 %v267, 4294901760
        %353 = vmatpush1.xpose.msra.mxu0 %v352
        %354 = vmatprep.subr.mxu0 0.0
        %v355 = vand.u32 %v268, 4294901760
        %356 = vmatpush1.xpose.msra.mxu0 %v355
        %357 = vmatprep.subr.mxu0 0.0
        %v358 = vand.u32 %v269, 4294901760
        %359 = vmatpush1.xpose.msra.mxu0 %v358
        %360 = vmatprep.subr.mxu0 0.0
        %v361 = vand.u32 %v270, 4294901760
        %362 = vmatpush1.xpose.msra.mxu0 %v361
        %363 = vmatprep.subr.mxu0 0.0
        %v364 = vand.u32 %v271, 4294901760
        %365 = vmatpush1.xpose.msra.mxu0 %v364
        %366 = vmatprep.subr.mxu0 0.0
        %v367 = vand.u32 %v272, 4294901760
        %368 = vmatpush1.xpose.msra.mxu0 %v367
        %369 = vmatprep.mubr.f32.mxu0 0.0
        %v370 = vand.u32 %v240, 4294901760
        %v371 = vsub.f32 %v240, %v370
        %v372 = vand.u32 %v371, 4294901760
        %v373 = vsub.f32 %v371, %v372
        %v374 = vand.u32 %v373, 4294901760
        %375 = vmatmul.mubr.f32.gmra.mrb[0].mxu0 %v374
        %v376 = vpop.f32.mrb[0].mxu0
        %v377 = vadd.f32 0.0, %v376
        %v378 = vpop.f32.mrb[0].mxu0
        %v379 = vadd.f32 0.0, %v378
        %380 = vdwg.mxu0
        %381 = vmatprep.subr.mxu0 0.0
        %v382 = vand.u32 %v241, 4294901760
        %v383 = vsub.f32 %v241, %v382
        %v384 = vand.u32 %v383, 4294901760
        %v385 = vsub.f32 %v383, %v384
        %v386 = vand.u32 %v385, 4294901760
        %387 = vmatpush1.xpose.msra.mxu0 %v386
        %388 = vmatprep.subr.mxu0 0.0
        %v389 = vand.u32 %v242, 4294901760
        %v390 = vsub.f32 %v242, %v389
        %v391 = vand.u32 %v390, 4294901760
        %v392 = vsub.f32 %v390, %v391
        %v393 = vand.u32 %v392, 4294901760
        %394 = vmatpush1.xpose.msra.mxu0 %v393
        %395 = vmatprep.subr.mxu0 0.0
        %v396 = vand.u32 %v243, 4294901760
        %v397 = vsub.f32 %v243, %v396
        %v398 = vand.u32 %v397, 4294901760
        %v399 = vsub.f32 %v397, %v398
        %v400 = vand.u32 %v399, 4294901760
        %401 = vmatpush1.xpose.msra.mxu0 %v400
        %402 = vmatprep.subr.mxu0 0.0
        %v403 = vand.u32 %v244, 4294901760
        %v404 = vsub.f32 %v244, %v403
        %v405 = vand.u32 %v404, 4294901760
        %v406 = vsub.f32 %v404, %v405
        %v407 = vand.u32 %v406, 4294901760
        %408 = vmatpush1.xpose.msra.mxu0 %v407
        %409 = vmatprep.subr.mxu0 0.0
        %v410 = vand.u32 %v245, 4294901760
        %v411 = vsub.f32 %v245, %v410
        %v412 = vand.u32 %v411, 4294901760
        %v413 = vsub.f32 %v411, %v412
        %v414 = vand.u32 %v413, 4294901760
        %415 = vmatpush1.xpose.msra.mxu0 %v414
        %416 = vmatprep.subr.mxu0 0.0
        %v417 = vand.u32 %v246, 4294901760
        %v418 = vsub.f32 %v246, %v417
        %v419 = vand.u32 %v418, 4294901760
        %v420 = vsub.f32 %v418, %v419
        %v421 = vand.u32 %v420, 4294901760
        %422 = vmatpush1.xpose.msra.mxu0 %v421
        %423 = vmatprep.subr.mxu0 0.0
        %v424 = vand.u32 %v247, 4294901760
        %v425 = vsub.f32 %v247, %v424
        %v426 = vand.u32 %v425, 4294901760
        %v427 = vsub.f32 %v425, %v426
        %v428 = vand.u32 %v427, 4294901760
        %429 = vmatpush1.xpose.msra.mxu0 %v428
        %430 = vmatprep.subr.mxu0 0.0
        %v431 = vand.u32 %v248, 4294901760
        %v432 = vsub.f32 %v248, %v431
        %v433 = vand.u32 %v432, 4294901760
        %v434 = vsub.f32 %v432, %v433
        %v435 = vand.u32 %v434, 4294901760
        %436 = vmatpush1.xpose.msra.mxu0 %v435
        %437 = vmatprep.subr.mxu0 0.0
        %v438 = vand.u32 %v249, 4294901760
        %v439 = vsub.f32 %v249, %v438
        %v440 = vand.u32 %v439, 4294901760
        %v441 = vsub.f32 %v439, %v440
        %v442 = vand.u32 %v441, 4294901760
        %443 = vmatpush1.xpose.msra.mxu0 %v442
        %444 = vmatprep.subr.mxu0 0.0
        %v445 = vand.u32 %v250, 4294901760
        %v446 = vsub.f32 %v250, %v445
        %v447 = vand.u32 %v446, 4294901760
        %v448 = vsub.f32 %v446, %v447
        %v449 = vand.u32 %v448, 4294901760
        %450 = vmatpush1.xpose.msra.mxu0 %v449
        %451 = vmatprep.subr.mxu0 0.0
        %v452 = vand.u32 %v251, 4294901760
        %v453 = vsub.f32 %v251, %v452
        %v454 = vand.u32 %v453, 4294901760
        %v455 = vsub.f32 %v453, %v454
        %v456 = vand.u32 %v455, 4294901760
        %457 = vmatpush1.xpose.msra.mxu0 %v456
        %458 = vmatprep.subr.mxu0 0.0
        %v459 = vand.u32 %v252, 4294901760
        %v460 = vsub.f32 %v252, %v459
        %v461 = vand.u32 %v460, 4294901760
        %v462 = vsub.f32 %v460, %v461
        %v463 = vand.u32 %v462, 4294901760
        %464 = vmatpush1.xpose.msra.mxu0 %v463
        %465 = vmatprep.subr.mxu0 0.0
        %v466 = vand.u32 %v253, 4294901760
        %v467 = vsub.f32 %v253, %v466
        %v468 = vand.u32 %v467, 4294901760
        %v469 = vsub.f32 %v467, %v468
        %v470 = vand.u32 %v469, 4294901760
        %471 = vmatpush1.xpose.msra.mxu0 %v470
        %472 = vmatprep.subr.mxu0 0.0
        %v473 = vand.u32 %v254, 4294901760
        %v474 = vsub.f32 %v254, %v473
        %v475 = vand.u32 %v474, 4294901760
        %v476 = vsub.f32 %v474, %v475
        %v477 = vand.u32 %v476, 4294901760
        %478 = vmatpush1.xpose.msra.mxu0 %v477
        %479 = vmatprep.subr.mxu0 0.0
        %v480 = vand.u32 %v255, 4294901760
        %v481 = vsub.f32 %v255, %v480
        %v482 = vand.u32 %v481, 4294901760
        %v483 = vsub.f32 %v481, %v482
        %v484 = vand.u32 %v483, 4294901760
        %485 = vmatpush1.xpose.msra.mxu0 %v484
        %486 = vmatprep.subr.mxu0 0.0
        %v487 = vand.u32 %v256, 4294901760
        %v488 = vsub.f32 %v256, %v487
        %v489 = vand.u32 %v488, 4294901760
        %v490 = vsub.f32 %v488, %v489
        %v491 = vand.u32 %v490, 4294901760
        %492 = vmatpush1.xpose.msra.mxu0 %v491
        %493 = vmatprep.subr.mxu0 0.0
        %v494 = vand.u32 %v257, 4294901760
        %v495 = vsub.f32 %v257, %v494
        %v496 = vand.u32 %v495, 4294901760
        %v497 = vsub.f32 %v495, %v496
        %v498 = vand.u32 %v497, 4294901760
        %499 = vmatpush1.xpose.msra.mxu0 %v498
        %500 = vmatprep.subr.mxu0 0.0
        %v501 = vand.u32 %v258, 4294901760
        %v502 = vsub.f32 %v258, %v501
        %v503 = vand.u32 %v502, 4294901760
        %v504 = vsub.f32 %v502, %v503
        %v505 = vand.u32 %v504, 4294901760
        %506 = vmatpush1.xpose.msra.mxu0 %v505
        %507 = vmatprep.subr.mxu0 0.0
        %v508 = vand.u32 %v259, 4294901760
        %v509 = vsub.f32 %v259, %v508
        %v510 = vand.u32 %v509, 4294901760
        %v511 = vsub.f32 %v509, %v510
        %v512 = vand.u32 %v511, 4294901760
        %513 = vmatpush1.xpose.msra.mxu0 %v512
        %514 = vmatprep.subr.mxu0 0.0
        %v515 = vand.u32 %v260, 4294901760
        %v516 = vsub.f32 %v260, %v515
        %v517 = vand.u32 %v516, 4294901760
        %v518 = vsub.f32 %v516, %v517
        %v519 = vand.u32 %v518, 4294901760
        %520 = vmatpush1.xpose.msra.mxu0 %v519
        %521 = vmatprep.subr.mxu0 0.0
        %v522 = vand.u32 %v261, 4294901760
        %v523 = vsub.f32 %v261, %v522
        %v524 = vand.u32 %v523, 4294901760
        %v525 = vsub.f32 %v523, %v524
        %v526 = vand.u32 %v525, 4294901760
        %527 = vmatpush1.xpose.msra.mxu0 %v526
        %528 = vmatprep.subr.mxu0 0.0
        %v529 = vand.u32 %v262, 4294901760
        %v530 = vsub.f32 %v262, %v529
        %v531 = vand.u32 %v530, 4294901760
        %v532 = vsub.f32 %v530, %v531
        %v533 = vand.u32 %v532, 4294901760
        %534 = vmatpush1.xpose.msra.mxu0 %v533
        %535 = vmatprep.subr.mxu0 0.0
        %v536 = vand.u32 %v263, 4294901760
        %v537 = vsub.f32 %v263, %v536
        %v538 = vand.u32 %v537, 4294901760
        %v539 = vsub.f32 %v537, %v538
        %v540 = vand.u32 %v539, 4294901760
        %541 = vmatpush1.xpose.msra.mxu0 %v540
        %542 = vmatprep.subr.mxu0 0.0
        %v543 = vand.u32 %v264, 4294901760
        %v544 = vsub.f32 %v264, %v543
        %v545 = vand.u32 %v544, 4294901760
        %v546 = vsub.f32 %v544, %v545
        %v547 = vand.u32 %v546, 4294901760
        %548 = vmatpush1.xpose.msra.mxu0 %v547
        %549 = vmatprep.subr.mxu0 0.0
        %v550 = vand.u32 %v265, 4294901760
        %v551 = vsub.f32 %v265, %v550
        %v552 = vand.u32 %v551, 4294901760
        %v553 = vsub.f32 %v551, %v552
        %v554 = vand.u32 %v553, 4294901760
        %555 = vmatpush1.xpose.msra.mxu0 %v554
        %556 = vmatprep.subr.mxu0 0.0
        %v557 = vand.u32 %v266, 4294901760
        %v558 = vsub.f32 %v266, %v557
        %v559 = vand.u32 %v558, 4294901760
        %v560 = vsub.f32 %v558, %v559
        %v561 = vand.u32 %v560, 4294901760
        %562 = vmatpush1.xpose.msra.mxu0 %v561
        %563 = vmatprep.subr.mxu0 0.0
        %v564 = vand.u32 %v267, 4294901760
        %v565 = vsub.f32 %v267, %v564
        %v566 = vand.u32 %v565, 4294901760
        %v567 = vsub.f32 %v565, %v566
        %v568 = vand.u32 %v567, 4294901760
        %569 = vmatpush1.xpose.msra.mxu0 %v568
        %570 = vmatprep.subr.mxu0 0.0
        %v571 = vand.u32 %v268, 4294901760
        %v572 = vsub.f32 %v268, %v571
        %v573 = vand.u32 %v572, 4294901760
        %v574 = vsub.f32 %v572, %v573
        %v575 = vand.u32 %v574, 4294901760
        %576 = vmatpush1.xpose.msra.mxu0 %v575
        %577 = vmatprep.subr.mxu0 0.0
        %v578 = vand.u32 %v269, 4294901760
        %v579 = vsub.f32 %v269, %v578
        %v580 = vand.u32 %v579, 4294901760
        %v581 = vsub.f32 %v579, %v580
        %v582 = vand.u32 %v581, 4294901760
        %583 = vmatpush1.xpose.msra.mxu0 %v582
        %584 = vmatprep.subr.mxu0 0.0
        %v585 = vand.u32 %v270, 4294901760
        %v586 = vsub.f32 %v270, %v585
        %v587 = vand.u32 %v586, 4294901760
        %v588 = vsub.f32 %v586, %v587
        %v589 = vand.u32 %v588, 4294901760
        %590 = vmatpush1.xpose.msra.mxu0 %v589
        %591 = vmatprep.subr.mxu0 0.0
        %v592 = vand.u32 %v271, 4294901760
        %v593 = vsub.f32 %v271, %v592
        %v594 = vand.u32 %v593, 4294901760
        %v595 = vsub.f32 %v593, %v594
        %v596 = vand.u32 %v595, 4294901760
        %597 = vmatpush1.xpose.msra.mxu0 %v596
        %598 = vmatprep.subr.mxu0 0.0
        %v599 = vand.u32 %v272, 4294901760
        %v600 = vsub.f32 %v272, %v599
        %v601 = vand.u32 %v600, 4294901760
        %v602 = vsub.f32 %v600, %v601
        %v603 = vand.u32 %v602, 4294901760
        %604 = vmatpush1.xpose.msra.mxu0 %v603
        %605 = vmatprep.mubr.f32.mxu0 0.0
        %v606 = vand.u32 %v240, 4294901760
        %607 = vmatmul.mubr.f32.gmra.mrb[0].mxu0 %v606
        %v608 = vpop.f32.mrb[0].mxu0
        %v609 = vadd.f32 %v377, %v608
        %v610 = vpop.f32.mrb[0].mxu0
        %v611 = vadd.f32 %v379, %v610
        %612 = vdwg.mxu0
        %613 = vmatprep.subr.mxu0 0.0
        %v614 = vand.u32 %v241, 4294901760
        %v615 = vsub.f32 %v241, %v614
        %616 = vmatpush1.xpose.msra.mxu0 %v615
        %617 = vmatprep.subr.mxu0 0.0
        %v618 = vand.u32 %v242, 4294901760
        %v619 = vsub.f32 %v242, %v618
        %620 = vmatpush1.xpose.msra.mxu0 %v619
        %621 = vmatprep.subr.mxu0 0.0
        %v622 = vand.u32 %v243, 4294901760
        %v623 = vsub.f32 %v243, %v622
        %624 = vmatpush1.xpose.msra.mxu0 %v623
        %625 = vmatprep.subr.mxu0 0.0
        %v626 = vand.u32 %v244, 4294901760
        %v627 = vsub.f32 %v244, %v626
        %628 = vmatpush1.xpose.msra.mxu0 %v627
        %629 = vmatprep.subr.mxu0 0.0
        %v630 = vand.u32 %v245, 4294901760
        %v631 = vsub.f32 %v245, %v630
        %632 = vmatpush1.xpose.msra.mxu0 %v631
        %633 = vmatprep.subr.mxu0 0.0
        %v634 = vand.u32 %v246, 4294901760
        %v635 = vsub.f32 %v246, %v634
        %636 = vmatpush1.xpose.msra.mxu0 %v635
        %637 = vmatprep.subr.mxu0 0.0
        %v638 = vand.u32 %v247, 4294901760
        %v639 = vsub.f32 %v247, %v638
        %640 = vmatpush1.xpose.msra.mxu0 %v639
        %641 = vmatprep.subr.mxu0 0.0
        %v642 = vand.u32 %v248, 4294901760
        %v643 = vsub.f32 %v248, %v642
        %644 = vmatpush1.xpose.msra.mxu0 %v643
        %645 = vmatprep.subr.mxu0 0.0
        %v646 = vand.u32 %v249, 4294901760
        %v647 = vsub.f32 %v249, %v646
        %648 = vmatpush1.xpose.msra.mxu0 %v647
        %649 = vmatprep.subr.mxu0 0.0
        %v650 = vand.u32 %v250, 4294901760
        %v651 = vsub.f32 %v250, %v650
        %652 = vmatpush1.xpose.msra.mxu0 %v651
        %653 = vmatprep.subr.mxu0 0.0
        %v654 = vand.u32 %v251, 4294901760
        %v655 = vsub.f32 %v251, %v654
        %656 = vmatpush1.xpose.msra.mxu0 %v655
        %657 = vmatprep.subr.mxu0 0.0
        %v658 = vand.u32 %v252, 4294901760
        %v659 = vsub.f32 %v252, %v658
        %660 = vmatpush1.xpose.msra.mxu0 %v659
        %661 = vmatprep.subr.mxu0 0.0
        %v662 = vand.u32 %v253, 4294901760
        %v663 = vsub.f32 %v253, %v662
        %664 = vmatpush1.xpose.msra.mxu0 %v663
        %665 = vmatprep.subr.mxu0 0.0
        %v666 = vand.u32 %v254, 4294901760
        %v667 = vsub.f32 %v254, %v666
        %668 = vmatpush1.xpose.msra.mxu0 %v667
        %669 = vmatprep.subr.mxu0 0.0
        %v670 = vand.u32 %v255, 4294901760
        %v671 = vsub.f32 %v255, %v670
        %672 = vmatpush1.xpose.msra.mxu0 %v671
        %673 = vmatprep.subr.mxu0 0.0
        %v674 = vand.u32 %v256, 4294901760
        %v675 = vsub.f32 %v256, %v674
        %676 = vmatpush1.xpose.msra.mxu0 %v675
        %677 = vmatprep.subr.mxu0 0.0
        %v678 = vand.u32 %v257, 4294901760
        %v679 = vsub.f32 %v257, %v678
        %680 = vmatpush1.xpose.msra.mxu0 %v679
        %681 = vmatprep.subr.mxu0 0.0
        %v682 = vand.u32 %v258, 4294901760
        %v683 = vsub.f32 %v258, %v682
        %684 = vmatpush1.xpose.msra.mxu0 %v683
        %685 = vmatprep.subr.mxu0 0.0
        %v686 = vand.u32 %v259, 4294901760
        %v687 = vsub.f32 %v259, %v686
        %688 = vmatpush1.xpose.msra.mxu0 %v687
        %689 = vmatprep.subr.mxu0 0.0
        %v690 = vand.u32 %v260, 4294901760
        %v691 = vsub.f32 %v260, %v690
        %692 = vmatpush1.xpose.msra.mxu0 %v691
        %693 = vmatprep.subr.mxu0 0.0
        %v694 = vand.u32 %v261, 4294901760
        %v695 = vsub.f32 %v261, %v694
        %696 = vmatpush1.xpose.msra.mxu0 %v695
        %697 = vmatprep.subr.mxu0 0.0
        %v698 = vand.u32 %v262, 4294901760
        %v699 = vsub.f32 %v262, %v698
        %700 = vmatpush1.xpose.msra.mxu0 %v699
        %701 = vmatprep.subr.mxu0 0.0
        %v702 = vand.u32 %v263, 4294901760
        %v703 = vsub.f32 %v263, %v702
        %704 = vmatpush1.xpose.msra.mxu0 %v703
        %705 = vmatprep.subr.mxu0 0.0
        %v706 = vand.u32 %v264, 4294901760
        %v707 = vsub.f32 %v264, %v706
        %708 = vmatpush1.xpose.msra.mxu0 %v707
        %709 = vmatprep.subr.mxu0 0.0
        %v710 = vand.u32 %v265, 4294901760
        %v711 = vsub.f32 %v265, %v710
        %712 = vmatpush1.xpose.msra.mxu0 %v711
        %713 = vmatprep.subr.mxu0 0.0
        %v714 = vand.u32 %v266, 4294901760
        %v715 = vsub.f32 %v266, %v714
        %716 = vmatpush1.xpose.msra.mxu0 %v715
        %717 = vmatprep.subr.mxu0 0.0
        %v718 = vand.u32 %v267, 4294901760
        %v719 = vsub.f32 %v267, %v718
        %720 = vmatpush1.xpose.msra.mxu0 %v719
        %721 = vmatprep.subr.mxu0 0.0
        %v722 = vand.u32 %v268, 4294901760
        %v723 = vsub.f32 %v268, %v722
        %724 = vmatpush1.xpose.msra.mxu0 %v723
        %725 = vmatprep.subr.mxu0 0.0
        %v726 = vand.u32 %v269, 4294901760
        %v727 = vsub.f32 %v269, %v726
        %728 = vmatpush1.xpose.msra.mxu0 %v727
        %729 = vmatprep.subr.mxu0 0.0
        %v730 = vand.u32 %v270, 4294901760
        %v731 = vsub.f32 %v270, %v730
        %732 = vmatpush1.xpose.msra.mxu0 %v731
        %733 = vmatprep.subr.mxu0 0.0
        %v734 = vand.u32 %v271, 4294901760
        %v735 = vsub.f32 %v271, %v734
        %736 = vmatpush1.xpose.msra.mxu0 %v735
        %737 = vmatprep.subr.mxu0 0.0
        %v738 = vand.u32 %v272, 4294901760
        %v739 = vsub.f32 %v272, %v738
        %740 = vmatpush1.xpose.msra.mxu0 %v739
        %741 = vmatprep.mubr.f32.mxu0 0.0
        %v742 = vand.u32 %v240, 4294901760
        %v743 = vsub.f32 %v240, %v742
        %744 = vmatmul.mubr.f32.gmra.mrb[0].mxu0 %v743
        %v745 = vpop.f32.mrb[0].mxu0
        %v746 = vadd.f32 %v609, %v745
        %v747 = vpop.f32.mrb[0].mxu0
        %v748 = vadd.f32 %v611, %v747
        %749 = vdwg.mxu0
        %750 = vmatprep.subr.mxu0 0.0
        %v751 = vand.u32 %v241, 4294901760
        %752 = vmatpush1.xpose.msra.mxu0 %v751
        %753 = vmatprep.subr.mxu0 0.0
        %v754 = vand.u32 %v242, 4294901760
        %755 = vmatpush1.xpose.msra.mxu0 %v754
        %756 = vmatprep.subr.mxu0 0.0
        %v757 = vand.u32 %v243, 4294901760
        %758 = vmatpush1.xpose.msra.mxu0 %v757
        %759 = vmatprep.subr.mxu0 0.0
        %v760 = vand.u32 %v244, 4294901760
        %761 = vmatpush1.xpose.msra.mxu0 %v760
        %762 = vmatprep.subr.mxu0 0.0
        %v763 = vand.u32 %v245, 4294901760
        %764 = vmatpush1.xpose.msra.mxu0 %v763
        %765 = vmatprep.subr.mxu0 0.0
        %v766 = vand.u32 %v246, 4294901760
        %767 = vmatpush1.xpose.msra.mxu0 %v766
        %768 = vmatprep.subr.mxu0 0.0
        %v769 = vand.u32 %v247, 4294901760
        %770 = vmatpush1.xpose.msra.mxu0 %v769
        %771 = vmatprep.subr.mxu0 0.0
        %v772 = vand.u32 %v248, 4294901760
        %773 = vmatpush1.xpose.msra.mxu0 %v772
        %774 = vmatprep.subr.mxu0 0.0
        %v775 = vand.u32 %v249, 4294901760
        %776 = vmatpush1.xpose.msra.mxu0 %v775
        %777 = vmatprep.subr.mxu0 0.0
        %v778 = vand.u32 %v250, 4294901760
        %779 = vmatpush1.xpose.msra.mxu0 %v778
        %780 = vmatprep.subr.mxu0 0.0
        %v781 = vand.u32 %v251, 4294901760
        %782 = vmatpush1.xpose.msra.mxu0 %v781
        %783 = vmatprep.subr.mxu0 0.0
        %v784 = vand.u32 %v252, 4294901760
        %785 = vmatpush1.xpose.msra.mxu0 %v784
        %786 = vmatprep.subr.mxu0 0.0
        %v787 = vand.u32 %v253, 4294901760
        %788 = vmatpush1.xpose.msra.mxu0 %v787
        %789 = vmatprep.subr.mxu0 0.0
        %v790 = vand.u32 %v254, 4294901760
        %791 = vmatpush1.xpose.msra.mxu0 %v790
        %792 = vmatprep.subr.mxu0 0.0
        %v793 = vand.u32 %v255, 4294901760
        %794 = vmatpush1.xpose.msra.mxu0 %v793
        %795 = vmatprep.subr.mxu0 0.0
        %v796 = vand.u32 %v256, 4294901760
        %797 = vmatpush1.xpose.msra.mxu0 %v796
        %798 = vmatprep.subr.mxu0 0.0
        %v799 = vand.u32 %v257, 4294901760
        %800 = vmatpush1.xpose.msra.mxu0 %v799
        %801 = vmatprep.subr.mxu0 0.0
        %v802 = vand.u32 %v258, 4294901760
        %803 = vmatpush1.xpose.msra.mxu0 %v802
        %804 = vmatprep.subr.mxu0 0.0
        %v805 = vand.u32 %v259, 4294901760
        %806 = vmatpush1.xpose.msra.mxu0 %v805
        %807 = vmatprep.subr.mxu0 0.0
        %v808 = vand.u32 %v260, 4294901760
        %809 = vmatpush1.xpose.msra.mxu0 %v808
        %810 = vmatprep.subr.mxu0 0.0
        %v811 = vand.u32 %v261, 4294901760
        %812 = vmatpush1.xpose.msra.mxu0 %v811
        %813 = vmatprep.subr.mxu0 0.0
        %v814 = vand.u32 %v262, 4294901760
        %815 = vmatpush1.xpose.msra.mxu0 %v814
        %816 = vmatprep.subr.mxu0 0.0
        %v817 = vand.u32 %v263, 4294901760
        %818 = vmatpush1.xpose.msra.mxu0 %v817
        %819 = vmatprep.subr.mxu0 0.0
        %v820 = vand.u32 %v264, 4294901760
        %821 = vmatpush1.xpose.msra.mxu0 %v820
        %822 = vmatprep.subr.mxu0 0.0
        %v823 = vand.u32 %v265, 4294901760
        %824 = vmatpush1.xpose.msra.mxu0 %v823
        %825 = vmatprep.subr.mxu0 0.0
        %v826 = vand.u32 %v266, 4294901760
        %827 = vmatpush1.xpose.msra.mxu0 %v826
        %828 = vmatprep.subr.mxu0 0.0
        %v829 = vand.u32 %v267, 4294901760
        %830 = vmatpush1.xpose.msra.mxu0 %v829
        %831 = vmatprep.subr.mxu0 0.0
        %v832 = vand.u32 %v268, 4294901760
        %833 = vmatpush1.xpose.msra.mxu0 %v832
        %834 = vmatprep.subr.mxu0 0.0
        %v835 = vand.u32 %v269, 4294901760
        %836 = vmatpush1.xpose.msra.mxu0 %v835
        %837 = vmatprep.subr.mxu0 0.0
        %v838 = vand.u32 %v270, 4294901760
        %839 = vmatpush1.xpose.msra.mxu0 %v838
        %840 = vmatprep.subr.mxu0 0.0
        %v841 = vand.u32 %v271, 4294901760
        %842 = vmatpush1.xpose.msra.mxu0 %v841
        %843 = vmatprep.subr.mxu0 0.0
        %v844 = vand.u32 %v272, 4294901760
        %845 = vmatpush1.xpose.msra.mxu0 %v844
        %846 = vmatprep.mubr.f32.mxu0 0.0
        %v847 = vand.u32 %v240, 4294901760
        %v848 = vsub.f32 %v240, %v847
        %v849 = vand.u32 %v848, 4294901760
        %850 = vmatmul.mubr.f32.gmra.mrb[0].mxu0 %v849
        %v851 = vpop.f32.mrb[0].mxu0
        %v852 = vadd.f32 %v746, %v851
        %v853 = vpop.f32.mrb[0].mxu0
        %v854 = vadd.f32 %v748, %v853
        %855 = vdwg.mxu0
        %856 = vmatprep.subr.mxu0 0.0
        %v857 = vand.u32 %v241, 4294901760
        %v858 = vsub.f32 %v241, %v857
        %v859 = vand.u32 %v858, 4294901760
        %860 = vmatpush1.xpose.msra.mxu0 %v859
        %861 = vmatprep.subr.mxu0 0.0
        %v862 = vand.u32 %v242, 4294901760
        %v863 = vsub.f32 %v242, %v862
        %v864 = vand.u32 %v863, 4294901760
        %865 = vmatpush1.xpose.msra.mxu0 %v864
        %866 = vmatprep.subr.mxu0 0.0
        %v867 = vand.u32 %v243, 4294901760
        %v868 = vsub.f32 %v243, %v867
        %v869 = vand.u32 %v868, 4294901760
        %870 = vmatpush1.xpose.msra.mxu0 %v869
        %871 = vmatprep.subr.mxu0 0.0
        %v872 = vand.u32 %v244, 4294901760
        %v873 = vsub.f32 %v244, %v872
        %v874 = vand.u32 %v873, 4294901760
        %875 = vmatpush1.xpose.msra.mxu0 %v874
        %876 = vmatprep.subr.mxu0 0.0
        %v877 = vand.u32 %v245, 4294901760
        %v878 = vsub.f32 %v245, %v877
        %v879 = vand.u32 %v878, 4294901760
        %880 = vmatpush1.xpose.msra.mxu0 %v879
        %881 = vmatprep.subr.mxu0 0.0
        %v882 = vand.u32 %v246, 4294901760
        %v883 = vsub.f32 %v246, %v882
        %v884 = vand.u32 %v883, 4294901760
        %885 = vmatpush1.xpose.msra.mxu0 %v884
        %886 = vmatprep.subr.mxu0 0.0
        %v887 = vand.u32 %v247, 4294901760
        %v888 = vsub.f32 %v247, %v887
        %v889 = vand.u32 %v888, 4294901760
        %890 = vmatpush1.xpose.msra.mxu0 %v889
        %891 = vmatprep.subr.mxu0 0.0
        %v892 = vand.u32 %v248, 4294901760
        %v893 = vsub.f32 %v248, %v892
        %v894 = vand.u32 %v893, 4294901760
        %895 = vmatpush1.xpose.msra.mxu0 %v894
        %896 = vmatprep.subr.mxu0 0.0
        %v897 = vand.u32 %v249, 4294901760
        %v898 = vsub.f32 %v249, %v897
        %v899 = vand.u32 %v898, 4294901760
        %900 = vmatpush1.xpose.msra.mxu0 %v899
        %901 = vmatprep.subr.mxu0 0.0
        %v902 = vand.u32 %v250, 4294901760
        %v903 = vsub.f32 %v250, %v902
        %v904 = vand.u32 %v903, 4294901760
        %905 = vmatpush1.xpose.msra.mxu0 %v904
        %906 = vmatprep.subr.mxu0 0.0
        %v907 = vand.u32 %v251, 4294901760
        %v908 = vsub.f32 %v251, %v907
        %v909 = vand.u32 %v908, 4294901760
        %910 = vmatpush1.xpose.msra.mxu0 %v909
        %911 = vmatprep.subr.mxu0 0.0
        %v912 = vand.u32 %v252, 4294901760
        %v913 = vsub.f32 %v252, %v912
        %v914 = vand.u32 %v913, 4294901760
        %915 = vmatpush1.xpose.msra.mxu0 %v914
        %916 = vmatprep.subr.mxu0 0.0
        %v917 = vand.u32 %v253, 4294901760
        %v918 = vsub.f32 %v253, %v917
        %v919 = vand.u32 %v918, 4294901760
        %920 = vmatpush1.xpose.msra.mxu0 %v919
        %921 = vmatprep.subr.mxu0 0.0
        %v922 = vand.u32 %v254, 4294901760
        %v923 = vsub.f32 %v254, %v922
        %v924 = vand.u32 %v923, 4294901760
        %925 = vmatpush1.xpose.msra.mxu0 %v924
        %926 = vmatprep.subr.mxu0 0.0
        %v927 = vand.u32 %v255, 4294901760
        %v928 = vsub.f32 %v255, %v927
        %v929 = vand.u32 %v928, 4294901760
        %930 = vmatpush1.xpose.msra.mxu0 %v929
        %931 = vmatprep.subr.mxu0 0.0
        %v932 = vand.u32 %v256, 4294901760
        %v933 = vsub.f32 %v256, %v932
        %v934 = vand.u32 %v933, 4294901760
        %935 = vmatpush1.xpose.msra.mxu0 %v934
        %936 = vmatprep.subr.mxu0 0.0
        %v937 = vand.u32 %v257, 4294901760
        %v938 = vsub.f32 %v257, %v937
        %v939 = vand.u32 %v938, 4294901760
        %940 = vmatpush1.xpose.msra.mxu0 %v939
        %941 = vmatprep.subr.mxu0 0.0
        %v942 = vand.u32 %v258, 4294901760
        %v943 = vsub.f32 %v258, %v942
        %v944 = vand.u32 %v943, 4294901760
        %945 = vmatpush1.xpose.msra.mxu0 %v944
        %946 = vmatprep.subr.mxu0 0.0
        %v947 = vand.u32 %v259, 4294901760
        %v948 = vsub.f32 %v259, %v947
        %v949 = vand.u32 %v948, 4294901760
        %950 = vmatpush1.xpose.msra.mxu0 %v949
        %951 = vmatprep.subr.mxu0 0.0
        %v952 = vand.u32 %v260, 4294901760
        %v953 = vsub.f32 %v260, %v952
        %v954 = vand.u32 %v953, 4294901760
        %955 = vmatpush1.xpose.msra.mxu0 %v954
        %956 = vmatprep.subr.mxu0 0.0
        %v957 = vand.u32 %v261, 4294901760
        %v958 = vsub.f32 %v261, %v957
        %v959 = vand.u32 %v958, 4294901760
        %960 = vmatpush1.xpose.msra.mxu0 %v959
        %961 = vmatprep.subr.mxu0 0.0
        %v962 = vand.u32 %v262, 4294901760
        %v963 = vsub.f32 %v262, %v962
        %v964 = vand.u32 %v963, 4294901760
        %965 = vmatpush1.xpose.msra.mxu0 %v964
        %966 = vmatprep.subr.mxu0 0.0
        %v967 = vand.u32 %v263, 4294901760
        %v968 = vsub.f32 %v263, %v967
        %v969 = vand.u32 %v968, 4294901760
        %970 = vmatpush1.xpose.msra.mxu0 %v969
        %971 = vmatprep.subr.mxu0 0.0
        %v972 = vand.u32 %v264, 4294901760
        %v973 = vsub.f32 %v264, %v972
        %v974 = vand.u32 %v973, 4294901760
        %975 = vmatpush1.xpose.msra.mxu0 %v974
        %976 = vmatprep.subr.mxu0 0.0
        %v977 = vand.u32 %v265, 4294901760
        %v978 = vsub.f32 %v265, %v977
        %v979 = vand.u32 %v978, 4294901760
        %980 = vmatpush1.xpose.msra.mxu0 %v979
        %981 = vmatprep.subr.mxu0 0.0
        %v982 = vand.u32 %v266, 4294901760
        %v983 = vsub.f32 %v266, %v982
        %v984 = vand.u32 %v983, 4294901760
        %985 = vmatpush1.xpose.msra.mxu0 %v984
        %986 = vmatprep.subr.mxu0 0.0
        %v987 = vand.u32 %v267, 4294901760
        %v988 = vsub.f32 %v267, %v987
        %v989 = vand.u32 %v988, 4294901760
        %990 = vmatpush1.xpose.msra.mxu0 %v989
        %991 = vmatprep.subr.mxu0 0.0
        %v992 = vand.u32 %v268, 4294901760
        %v993 = vsub.f32 %v268, %v992
        %v994 = vand.u32 %v993, 4294901760
        %995 = vmatpush1.xpose.msra.mxu0 %v994
        %996 = vmatprep.subr.mxu0 0.0
        %v997 = vand.u32 %v269, 4294901760
        %v998 = vsub.f32 %v269, %v997
        %v999 = vand.u32 %v998, 4294901760
        %1000 = vmatpush1.xpose.msra.mxu0 %v999
        %1001 = vmatprep.subr.mxu0 0.0
        %v1002 = vand.u32 %v270, 4294901760
        %v1003 = vsub.f32 %v270, %v1002
        %v1004 = vand.u32 %v1003, 4294901760
        %1005 = vmatpush1.xpose.msra.mxu0 %v1004
        %1006 = vmatprep.subr.mxu0 0.0
        %v1007 = vand.u32 %v271, 4294901760
        %v1008 = vsub.f32 %v271, %v1007
        %v1009 = vand.u32 %v1008, 4294901760
        %1010 = vmatpush1.xpose.msra.mxu0 %v1009
        %1011 = vmatprep.subr.mxu0 0.0
        %v1012 = vand.u32 %v272, 4294901760
        %v1013 = vsub.f32 %v272, %v1012
        %v1014 = vand.u32 %v1013, 4294901760
        %1015 = vmatpush1.xpose.msra.mxu0 %v1014
        %1016 = vmatprep.mubr.f32.mxu0 0.0
        %v1017 = vand.u32 %v240, 4294901760
        %1018 = vmatmul.mubr.f32.gmra.mrb[0].mxu0 %v1017
        %v1019 = vpop.f32.mrb[0].mxu0
        %v1020 = vadd.f32 %v852, %v1019
        %v1021 = vpop.f32.mrb[0].mxu0
        %v1022 = vadd.f32 %v854, %v1021
        %1023 = vdwg.mxu0
        %1024 = vmatprep.subr.mxu0 0.0
        %v1025 = vand.u32 %v241, 4294901760
        %1026 = vmatpush1.xpose.msra.mxu0 %v1025
        %1027 = vmatprep.subr.mxu0 0.0
        %v1028 = vand.u32 %v242, 4294901760
        %1029 = vmatpush1.xpose.msra.mxu0 %v1028
        %1030 = vmatprep.subr.mxu0 0.0
        %v1031 = vand.u32 %v243, 4294901760
        %1032 = vmatpush1.xpose.msra.mxu0 %v1031
        %1033 = vmatprep.subr.mxu0 0.0
        %v1034 = vand.u32 %v244, 4294901760
        %1035 = vmatpush1.xpose.msra.mxu0 %v1034
        %1036 = vmatprep.subr.mxu0 0.0
        %v1037 = vand.u32 %v245, 4294901760
        %1038 = vmatpush1.xpose.msra.mxu0 %v1037
        %1039 = vmatprep.subr.mxu0 0.0
        %v1040 = vand.u32 %v246, 4294901760
        %1041 = vmatpush1.xpose.msra.mxu0 %v1040
        %1042 = vmatprep.subr.mxu0 0.0
        %v1043 = vand.u32 %v247, 4294901760
        %1044 = vmatpush1.xpose.msra.mxu0 %v1043
        %1045 = vmatprep.subr.mxu0 0.0
        %v1046 = vand.u32 %v248, 4294901760
        %1047 = vmatpush1.xpose.msra.mxu0 %v1046
        %1048 = vmatprep.subr.mxu0 0.0
        %v1049 = vand.u32 %v249, 4294901760
        %1050 = vmatpush1.xpose.msra.mxu0 %v1049
        %1051 = vmatprep.subr.mxu0 0.0
        %v1052 = vand.u32 %v250, 4294901760
        %1053 = vmatpush1.xpose.msra.mxu0 %v1052
        %1054 = vmatprep.subr.mxu0 0.0
        %v1055 = vand.u32 %v251, 4294901760
        %1056 = vmatpush1.xpose.msra.mxu0 %v1055
        %1057 = vmatprep.subr.mxu0 0.0
        %v1058 = vand.u32 %v252, 4294901760
        %1059 = vmatpush1.xpose.msra.mxu0 %v1058
        %1060 = vmatprep.subr.mxu0 0.0
        %v1061 = vand.u32 %v253, 4294901760
        %1062 = vmatpush1.xpose.msra.mxu0 %v1061
        %1063 = vmatprep.subr.mxu0 0.0
        %v1064 = vand.u32 %v254, 4294901760
        %1065 = vmatpush1.xpose.msra.mxu0 %v1064
        %1066 = vmatprep.subr.mxu0 0.0
        %v1067 = vand.u32 %v255, 4294901760
        %1068 = vmatpush1.xpose.msra.mxu0 %v1067
        %1069 = vmatprep.subr.mxu0 0.0
        %v1070 = vand.u32 %v256, 4294901760
        %1071 = vmatpush1.xpose.msra.mxu0 %v1070
        %1072 = vmatprep.subr.mxu0 0.0
        %v1073 = vand.u32 %v257, 4294901760
        %1074 = vmatpush1.xpose.msra.mxu0 %v1073
        %1075 = vmatprep.subr.mxu0 0.0
        %v1076 = vand.u32 %v258, 4294901760
        %1077 = vmatpush1.xpose.msra.mxu0 %v1076
        %1078 = vmatprep.subr.mxu0 0.0
        %v1079 = vand.u32 %v259, 4294901760
        %1080 = vmatpush1.xpose.msra.mxu0 %v1079
        %1081 = vmatprep.subr.mxu0 0.0
        %v1082 = vand.u32 %v260, 4294901760
        %1083 = vmatpush1.xpose.msra.mxu0 %v1082
        %1084 = vmatprep.subr.mxu0 0.0
        %v1085 = vand.u32 %v261, 4294901760
        %1086 = vmatpush1.xpose.msra.mxu0 %v1085
        %1087 = vmatprep.subr.mxu0 0.0
        %v1088 = vand.u32 %v262, 4294901760
        %1089 = vmatpush1.xpose.msra.mxu0 %v1088
        %1090 = vmatprep.subr.mxu0 0.0
        %v1091 = vand.u32 %v263, 4294901760
        %1092 = vmatpush1.xpose.msra.mxu0 %v1091
        %1093 = vmatprep.subr.mxu0 0.0
        %v1094 = vand.u32 %v264, 4294901760
        %1095 = vmatpush1.xpose.msra.mxu0 %v1094
        %1096 = vmatprep.subr.mxu0 0.0
        %v1097 = vand.u32 %v265, 4294901760
        %1098 = vmatpush1.xpose.msra.mxu0 %v1097
        %1099 = vmatprep.subr.mxu0 0.0
        %v1100 = vand.u32 %v266, 4294901760
        %1101 = vmatpush1.xpose.msra.mxu0 %v1100
        %1102 = vmatprep.subr.mxu0 0.0
        %v1103 = vand.u32 %v267, 4294901760
        %1104 = vmatpush1.xpose.msra.mxu0 %v1103
        %1105 = vmatprep.subr.mxu0 0.0
        %v1106 = vand.u32 %v268, 4294901760
        %1107 = vmatpush1.xpose.msra.mxu0 %v1106
        %1108 = vmatprep.subr.mxu0 0.0
        %v1109 = vand.u32 %v269, 4294901760
        %1110 = vmatpush1.xpose.msra.mxu0 %v1109
        %1111 = vmatprep.subr.mxu0 0.0
        %v1112 = vand.u32 %v270, 4294901760
        %1113 = vmatpush1.xpose.msra.mxu0 %v1112
        %1114 = vmatprep.subr.mxu0 0.0
        %v1115 = vand.u32 %v271, 4294901760
        %1116 = vmatpush1.xpose.msra.mxu0 %v1115
        %1117 = vmatprep.subr.mxu0 0.0
        %v1118 = vand.u32 %v272, 4294901760
        %1119 = vmatpush1.xpose.msra.mxu0 %v1118
        %1120 = vmatprep.mubr.f32.mxu0 0.0
        %v1121 = vand.u32 %v240, 4294901760
        %1122 = vmatmul.mubr.f32.gmra.mrb[0].mxu0 %v1121
        %v1123 = vpop.f32.mrb[0].mxu0
        %v1124 = vadd.f32 %v1020, %v1123
        %v1125 = vpop.f32.mrb[0].mxu0
        %v1126 = vadd.f32 %v1022, %v1125
        %1127 = vdwg.mxu0
        %v1128 = vadd.f32 %v238, %v1124
        %v1129 = vadd.f32 %v239, %v1126
        %1130 = vst [vmem:[#allocation2] sm:$0xff] %v1128
        %1131 = vst [vmem:[#allocation2 + $0x8] sm:$0xff] %v1129
        // Predicated region
        $region41: #{tpu_custom_call.1} parent=31 // pred_check
          %p1132 = pneg %p232
        $region42: #{tpu_custom_call.1} parent=31 // pred_check_branch
          %1134 = sbr.rel (%p1132) target = $region44
        $region43: #{tpu_custom_call.1} parent=31 // pred_region
          %v1135 = vld [vmem:[#allocation2] sm:$0xff]
          %v1136 = vld [vmem:[#allocation2 + $0x8] sm:$0xff]
          %v1137 = vld [vmem:[%s2] sm:$0xff]
          %1139 = vset.pattern.permute.xlu0 0
          %1140 = vperm.xlu0 %1139, %v1137
          %v1141 = vpop.permute.xlu0 %1140
          %v1143 = vadd.f32 %v1135, %v1141
          %v1144 = vadd.f32 %v1136, %v1141
          %v1145 = vrot.slane %v1143, 4
          %v1146 = vmin.f32 %v1143, %v1145
          %v1147 = vrot.slane %v1146, 2
          %v1148 = vmin.f32 %v1146, %v1147
          %v1149 = vrot.slane %v1148, 1
          %v1150 = vmin.f32 %v1148, %v1149
          %v1151 = vrot.slane %v1144, 4
          %v1152 = vmin.f32 %v1144, %v1151
          %v1153 = vrot.slane %v1152, 2
          %v1154 = vmin.f32 %v1152, %v1153
          %v1155 = vrot.slane %v1154, 1
          %v1156 = vmin.f32 %v1154, %v1155
          %vm1157 = vcmp.ge.f32.partialorder %v1150, 0.0
          %vm1158 = vcmp.ge.f32.partialorder %v1156, 0.0
          %v1159 = vsel %vm1157, 1, 0
          %v1160 = vsel %vm1158, 1, 0
          %v1161 = vcombine.low %v1159, %v1160
          %v1163 = vunpack.c.l.s4 1966171168
          %v1164 = vunpack.c.0.s8 %v1163
          %v1165 = vlaneseq
          %v1166 = vshrl.u32 %v1165, 7
          %v1167 = vsub.s32 %v1164, %v1166
          %v1168 = vrot.slane %v1161, %v1167
          %v1170 = vunpack.c.l.s4 1966171168
          %v1171 = vunpack.c.0.s8 %v1170
          %v1172 = vlaneseq
          %v1173 = vshrl.u32 %v1172, 7
          %v1174 = vsub.s32 %v1171, %v1173
          %v1175 = vrot.slane %v1168, %v1174
          %v1176 = vlaneseq
          %vm1177 = vcmp.ge.s32.totalorder %v1176, 0
          %vm1178 = vcmp.lt.s32.totalorder %v1176, 256
          %vm1179 = vmand %vm1177, %vm1178
          %1180 = vst.msk [vmem:[%s222] sm:$0x3] %vm1179, %v1175
        $region44: #{tpu_custom_call.1} parent=31 // pred_fallthru
          _
        %s1181 = sand.u32 %s115, 1
        %s1182 = scalar_lea.sflag [#allocation5], %s1181
        %s1183 = sand.u32 %s115, 1
        %s1184 = smul.addr %s1183, 2
        %s1185 = scalar_lea.vmem [#allocation6], %s1184
        // Predicated region
        $region45: #{tpu_custom_call.1} parent=31 // pred_check
          %p1186 = pneg %p125
        $region46: #{tpu_custom_call.1} parent=31 // pred_check_branch
          %1188 = sbr.rel (%p1186) target = $region48
        $region47: #{tpu_custom_call.1} parent=31 // pred_region
          %s1190 = ssub.s32 32, 32
          %1191 = vsyncadd %s1182, %s1190
          %s1192 = smul.addr %s24, 2
          %s1193 = smul.addr %s1192, 16
          %s1194 = scalar_lea.hbm %s3, %s1193
          %s1196 = sshll.u32 %s1185, 4
          %s1197 = int_to_ptr.vmem [resolvable:$true] %s1196
          %1199 = dma.vmem_to_hbm [thread:$0]  %s1197, 32, %s1194, %s1182
        $region48: #{tpu_custom_call.1} parent=31 // pred_fallthru
          _
      $region32: #{tpu_custom_call.1} parent=5 // pred_fallthru
        _
      %p1200 = scmp.le.s32.totalorder 2, %s15
      // Predicated region
      $region49: #{tpu_custom_call.1} parent=5 // pred_check
        %p1201 = pneg %p1200
      $region50: #{tpu_custom_call.1} parent=5 // pred_check_branch
        %1203 = sbr.rel (%p1201) target = $region52
      $region51: #{tpu_custom_call.1} parent=5 // pred_region
        %s1204 = ssub.s32 %s15, 2
        // Predicated region
        $region53: #{tpu_custom_call.1} parent=51 // pred_check
          %p1205 = pneg %p131
        $region54: #{tpu_custom_call.1} parent=51 // pred_check_branch
          %1207 = sbr.rel (%p1205) target = $region56
        $region55: #{tpu_custom_call.1} parent=51 // pred_region
          %s1208 = sand.u32 %s116, 1
          %s1209 = scalar_lea.sflag [#allocation5], %s1208
          %s1210 = sand.u32 %s116, 1
          %s1211 = smul.addr %s1210, 2
          %s1212 = scalar_lea.vmem [#allocation6], %s1211
          %1213 = dma.done %s1209, 32
        $region56: #{tpu_custom_call.1} parent=51 // pred_fallthru
          _
      $region52: #{tpu_custom_call.1} parent=5 // pred_fallthru
        _
    $region6: #{tpu_custom_call.1} parent=1 // loop_footer
      %s19 = sadd.s32 1, %s15
    $region7: #{tpu_custom_call.1} parent=1 // loop_footer_branch
      %14 = sbr.rel target = $region3
    $region8: #{tpu_custom_call.1} parent=1 // loop_exit
      _
    %1214 = vsyncpa [#allocation4], 1
    %s1215 = scalar_lea.sflag [#allocation4], 1
    %1216 = vsyncpa %s1215, 1
    %1217 = vsyncpa [#allocation5], 1
    %s1218 = scalar_lea.sflag [#allocation5], 1
    %1219 = vsyncpa %s1218, 1

</llo_original>
